<compile_context>
chip_gen: v7x
topology: tpu7x:2x2x1
jax: 0.10.0
libtpu: 0.0.40
codegen_flags: <defaults>
</compile_context>

<pallas_src>
import functools

import jax
import jax.numpy as jnp
from jax.experimental import pallas as pl
from jax.experimental.pallas import tpu as pltpu


def _round_up(n, m):
    return ((n + m - 1) // m) * m


def _is_v5e():
    try:
        kind = jax.devices()[0].device_kind.lower()
        return ("v5 lite" in kind) or ("v5e" in kind) or ("v5lite" in kind)
    except Exception:
        return False


def stocha_policy_kernel(x_ref, c_ref, c2_ref, ninv_ref, w_ref,
                         scale_ref, offset_ref, o_ref, *,
                         act_dim, min_log_std, max_log_std):
    x = x_ref[...]                                                    # (TB, D)

    # Squared distance via ||x||^2 + ||c||^2 - 2 x.c ; centers pre-scaled by -2
    # and pre-transposed to (D, Kp) in the wrapper -> one MXU matmul, no
    # in-kernel transpose and no VPU "2*" multiply.  HIGHEST precision guards
    # against bf16-pass cancellation; max(.,0) guards residual cancellation.
    x2 = jnp.sum(x * x, axis=-1, keepdims=True)                       # (TB, 1)
    xc = jnp.dot(x, c_ref[...], preferred_element_type=jnp.float32,
                 precision=jax.lax.Precision.HIGHEST)                 # (TB, Kp)
    r = jnp.maximum(x2 + c2_ref[...] + xc, 0.0)
    phi = jnp.exp(r * ninv_ref[...])                                  # (TB, Kp)

    # Both heads (and their biases, via the constant-1 phi slot) in one matmul
    # through the block-diagonal (Kp, 2A_p) weight.
    q = jnp.dot(phi, w_ref[...], preferred_element_type=jnp.float32)  # (TB, 2A_p)

    lin = scale_ref[...] * q + offset_ref[...]                 # correct on mean columns
    std = jnp.exp(jnp.clip(q, min_log_std, max_log_std))       # correct on std columns
    tb, wout = o_ref.shape
    is_mean = jax.lax.broadcasted_iota(jnp.int32, (tb, wout), 1) < act_dim
    o_ref[...] = jnp.where(is_mean, lin, std)


def stocha_policy_forward(obs, mean_params, std_params, act_high, act_low,
                          min_log_std, max_log_std, *, max_batch_tile=4096,
                          lane_dense_output=None):
    """mean_params / std_params = (C (1,K,D), sigma_square (1,K), w (1,A,K), b (1,A,1))."""
    Cm, sig_m, wm, bm = mean_params
    Cs, sig_s, ws, bs = std_params
    B, D = obs.shape
    _, K, _ = Cm.shape
    _, A, _ = wm.shape
    f32 = jnp.float32
    two_a = 2 * A

    if lane_dense_output is None:
        # Lane-padded output inflates HBM write bytes 8x; not worth it on v5e's
        # ~820 GB/s HBM.  Clear win on v6e / v7x.
        lane_dense_output = not _is_v5e()
    two_a_p = _round_up(two_a, 128) if lane_dense_output else two_a

    # ---- parameter-only preprocessing hoisted out of the kernel ----
    C_cat = jnp.concatenate([Cm[0].T, Cs[0].T], axis=1).astype(f32)        # (D, 2K)
    c2 = jnp.sum(C_cat * C_cat, axis=0, keepdims=True)                     # (1, 2K)  ||c||^2
    Cn = -2.0 * C_cat                                                      # (D, 2K)  pre-scaled
    sig_cat = jnp.concatenate([sig_m, sig_s], axis=1).astype(f32)          # (1, 2K)
    neg_inv = -1.0 / (2.0 * jnp.abs(sig_cat))                              # (1, 2K)

    # Kernel axis: 2K real slots + 1 constant-1 phi slot (holds the biases),
    # padded up to a multiple of 128 (lane-dense).  Padded / bias slots have
    # zero C column, zero c2 and neg_inv = 0 -> phi = exp(0) = 1 there; padded
    # W rows are zero so only the bias row contributes.
    Kb = 2 * K + 1
    Kp = _round_up(Kb, 128)
    Cn = jnp.pad(Cn, ((0, 0), (0, Kp - 2 * K)))                            # (D, Kp)
    c2 = jnp.pad(c2, ((0, 0), (0, Kp - 2 * K)))                            # (1, Kp)
    neg_inv = jnp.pad(neg_inv, ((0, 0), (0, Kp - 2 * K)))                  # (1, Kp)

    W_bd = jnp.zeros((Kp, two_a_p), f32)
    W_bd = W_bd.at[:K, :A].set(wm[0].T).at[K:2 * K, A:two_a].set(ws[0].T)
    W_bd = W_bd.at[2 * K, :A].set(bm[0, :, 0].astype(f32))                 # mean bias
    W_bd = W_bd.at[2 * K, A:two_a].set(bs[0, :, 0].astype(f32))            # std bias

    scale = jnp.ones((two_a_p,), f32).at[:A].set(
        ((act_high - act_low) / 2.0).astype(f32))[None, :]                 # (1, 2A_p)
    offset = jnp.zeros((two_a_p,), f32).at[:A].set(
        ((act_high + act_low) / 2.0).astype(f32))[None, :]                 # (1, 2A_p)

    # ---- batch tiling ----
    # Sublane-align; split into >= 2 grid steps whenever possible so the
    # "parallel" batch axis shards across v7x's two TensorCores; cap the tile
    # at max_batch_tile (~10-13 MiB live VMEM at 4096, safe on every chip's
    # default scoped limit incl. v7x).
    Bp = _round_up(B, 8)
    if Bp <= 8:
        TB = Bp                                        # cannot split below sublane 8
    elif Bp <= 2 * max_batch_tile:
        TB = _round_up(pl.cdiv(Bp, 2), 8)              # exactly 2 equal grid steps
        Bp = 2 * TB
    else:
        TB = max_batch_tile
        Bp = _round_up(Bp, TB)

    obs_p = obs.astype(f32)
    if Bp != B:
        obs_p = jnp.pad(obs_p, ((0, Bp - B), (0, 0)))

    kernel = functools.partial(stocha_policy_kernel, act_dim=A,
                               min_log_std=float(min_log_std),
                               max_log_std=float(max_log_std))
    const = lambda i: (0, 0)

    out = pl.pallas_call(
        kernel,
        out_shape=jax.ShapeDtypeStruct((Bp, two_a_p), f32),
        grid=(Bp // TB,),
        in_specs=[
            pl.BlockSpec((TB, D), lambda i: (i, 0)),   # obs tile
            pl.BlockSpec((D, Kp), const),              # -2 * centers (pre-transposed, concat)
            pl.BlockSpec((1, Kp), const),              # ||c||^2
            pl.BlockSpec((1, Kp), const),              # -1/(2*|sigma|)  (0 on bias/pad slots)
            pl.BlockSpec((Kp, two_a_p), const),        # block-diag weights (+ bias row)
            pl.BlockSpec((1, two_a_p), const),         # [(high-low)/2 | 1 | 1...]
            pl.BlockSpec((1, two_a_p), const),         # [(high+low)/2 | 0 | 0...]
        ],
        out_specs=pl.BlockSpec((TB, two_a_p), lambda i: (i, 0)),
        compiler_params=pltpu.CompilerParams(
            dimension_semantics=("parallel",),
        ),
    )(obs_p, Cn, c2, neg_inv, W_bd, scale, offset)
    return out[:B, :two_a]


# ---------------- pure-JAX reference mirroring the PyTorch module ----------------
def _rbf_ref(x, C, sigma_square, w, b):
    r = jnp.sum((x[:, None, :] - C) ** 2, axis=-1)                    # (B, K)
    phi = jnp.exp(-r / (2.0 * jnp.abs(sigma_square)))[..., None]      # (B, K, 1)
    return (w @ phi + b).squeeze(-1)                                  # (B, A)


def stocha_policy_ref(obs, mean_params, std_params, act_high, act_low,
                      min_log_std, max_log_std):
    mean = _rbf_ref(obs, *mean_params)
    std = jnp.exp(jnp.clip(_rbf_ref(obs, *std_params), min_log_std, max_log_std))
    action_mean = (act_high - act_low) / 2.0 * mean + (act_high + act_low) / 2.0
    return jnp.concatenate([action_mean, std], axis=-1)


if __name__ == "__main__":
    batch = 8
    obs_dim = 16       # kwargs['obs_dim']
    act_dim = 8        # kwargs['act_dim']
    num_kernel = 32    # kwargs['num_kernel']
    min_log_std = -5.0
    max_log_std = 2.0

    key = jax.random.PRNGKey(0)
    keys = jax.random.split(key, 10)

    obs = jax.random.normal(keys[0], (batch, obs_dim), dtype=jnp.float32)

    def rbf_params(k1, k2, k3, k4):
        C = jax.random.normal(k1, (1, num_kernel, obs_dim), dtype=jnp.float32)
        sig = jnp.abs(jax.random.normal(k2, (1, num_kernel), dtype=jnp.float32)) + 0.1
        w = jax.random.normal(k3, (1, act_dim, num_kernel), dtype=jnp.float32)
        b = jax.random.normal(k4, (1, act_dim, 1), dtype=jnp.float32)
        return C, sig, w, b

    mean_params = rbf_params(*keys[1:5])
    std_params = rbf_params(*keys[5:9])

    act_high = jnp.full((act_dim,), 2.0, dtype=jnp.float32)   # register_buffer act_high_lim
    act_low = jnp.full((act_dim,), -1.0, dtype=jnp.float32)   # register_buffer act_low_lim

    out = stocha_policy_forward(obs, mean_params, std_params, act_high, act_low,
                                min_log_std, max_log_std)
    out = jax.block_until_ready(out)

    ref = stocha_policy_ref(obs, mean_params, std_params, act_high, act_low,
                            min_log_std, max_log_std)
    assert out.shape == (batch, 2 * act_dim)
    assert jnp.allclose(out, ref, atol=5e-4, rtol=5e-4), (
        f"max abs err = {jnp.max(jnp.abs(out - ref))}"
    )

    # Also exercise a larger, non-aligned batch (multi-step grid, padded rows).
    big_obs = jax.random.normal(keys[9], (1000, obs_dim), dtype=jnp.float32)
    big_out = jax.block_until_ready(
        stocha_policy_forward(big_obs, mean_params, std_params, act_high, act_low,
                              min_log_std, max_log_std))
    big_ref = stocha_policy_ref(big_obs, mean_params, std_params, act_high, act_low,
                                min_log_std, max_log_std)
    assert big_out.shape == (1000, 2 * act_dim)
    assert jnp.allclose(big_out, big_ref, atol=5e-4, rtol=5e-4), (
        f"max abs err = {jnp.max(jnp.abs(big_out - big_ref))}"
    )
    print("KERNEL_OK")
</pallas_src>

<mosaic_0001>
module attributes {stable_mosaic.version = 11 : i64} {
  func.func @stocha_policy_kernel(%arg0: i32, %arg1: memref<8x16xf32, #tpu.memory_space<vmem>>, %arg2: memref<16x128xf32, #tpu.memory_space<vmem>>, %arg3: memref<1x128xf32, #tpu.memory_space<vmem>>, %arg4: memref<1x128xf32, #tpu.memory_space<vmem>>, %arg5: memref<128x128xf32, #tpu.memory_space<vmem>>, %arg6: memref<1x128xf32, #tpu.memory_space<vmem>>, %arg7: memref<1x128xf32, #tpu.memory_space<vmem>>, %arg8: memref<8x128xf32, #tpu.memory_space<vmem>>) attributes {dimension_semantics = [#tpu.dimension_semantics<parallel>], iteration_bounds = array<i64: 1>, scalar_prefetch = 0 : i64, scratch_operands = 0 : i64, tpu.core_type = #tpu.core_type<tc>, window_params = [{transform_indices = @transform_0, window_bounds = array<i64: 8, 16>}, {pipeline_mode = #tpu.pipeline_mode<synchronous>, transform_indices = @transform_1, window_bounds = array<i64: 16, 128>}, {pipeline_mode = #tpu.pipeline_mode<synchronous>, transform_indices = @transform_2, window_bounds = array<i64: 1, 128>}, {pipeline_mode = #tpu.pipeline_mode<synchronous>, transform_indices = @transform_3, window_bounds = array<i64: 1, 128>}, {pipeline_mode = #tpu.pipeline_mode<synchronous>, transform_indices = @transform_4, window_bounds = array<i64: 128, 128>}, {pipeline_mode = #tpu.pipeline_mode<synchronous>, transform_indices = @transform_5, window_bounds = array<i64: 1, 128>}, {pipeline_mode = #tpu.pipeline_mode<synchronous>, transform_indices = @transform_6, window_bounds = array<i64: 1, 128>}, {transform_indices = @transform_7, window_bounds = array<i64: 8, 128>}]} {
    %c0 = arith.constant 0 : index
    %c0_0 = arith.constant 0 : index
    %0 = vector.load %arg1[%c0, %c0_0] : memref<8x16xf32, #tpu.memory_space<vmem>>, vector<8x16xf32>
    %1 = arith.mulf %0, %0 : vector<8x16xf32>
    %cst = arith.constant dense<0.000000e+00> : vector<8xf32>
    %2 = vector.multi_reduction <add>, %1, %cst [1] : vector<8x16xf32> to vector<8xf32>
    %3 = vector.shape_cast %2 : vector<8xf32> to vector<8x1xf32>
    %c0_1 = arith.constant 0 : index
    %c0_2 = arith.constant 0 : index
    %4 = vector.load %arg2[%c0_1, %c0_2] : memref<16x128xf32, #tpu.memory_space<vmem>>, vector<16x128xf32>
    %cst_3 = arith.constant dense<0.000000e+00> : vector<8x128xf32>
    %5 = tpu.matmul %0, %4, %cst_3 {dimension_numbers = #tpu.dot_dimension_numbers<[1], [0], [0], [1], [0, 0, 1, 1], [], []>, precision = #tpu.contract_precision<fp32>} : vector<8x16xf32>, vector<16x128xf32>, vector<8x128xf32> -> vector<8x128xf32>
    %c0_4 = arith.constant 0 : index
    %c0_5 = arith.constant 0 : index
    %6 = vector.load %arg3[%c0_4, %c0_5] : memref<1x128xf32, #tpu.memory_space<vmem>>, vector<1x128xf32>
    %7 = vector.broadcast %3 : vector<8x1xf32> to vector<8x128xf32>
    %8 = vector.broadcast %6 : vector<1x128xf32> to vector<8x128xf32>
    %9 = arith.addf %7, %8 : vector<8x128xf32>
    %10 = arith.addf %9, %5 : vector<8x128xf32>
    %cst_6 = arith.constant 0.000000e+00 : f32
    %11 = vector.broadcast %cst_6 : f32 to vector<8x128xf32>
    %12 = arith.maximumf %10, %11 : vector<8x128xf32>
    %c0_7 = arith.constant 0 : index
    %c0_8 = arith.constant 0 : index
    %13 = vector.load %arg4[%c0_7, %c0_8] : memref<1x128xf32, #tpu.memory_space<vmem>>, vector<1x128xf32>
    %14 = vector.broadcast %13 : vector<1x128xf32> to vector<8x128xf32>
    %15 = arith.mulf %12, %14 : vector<8x128xf32>
    %16 = math.exp %15 : vector<8x128xf32>
    %c0_9 = arith.constant 0 : index
    %c0_10 = arith.constant 0 : index
    %17 = vector.load %arg5[%c0_9, %c0_10] : memref<128x128xf32, #tpu.memory_space<vmem>>, vector<128x128xf32>
    %cst_11 = arith.constant dense<0.000000e+00> : vector<8x128xf32>
    %18 = tpu.matmul %16, %17, %cst_11 {dimension_numbers = #tpu.dot_dimension_numbers<[1], [0], [0], [1], [0, 0, 1, 1], [], []>} : vector<8x128xf32>, vector<128x128xf32>, vector<8x128xf32> -> vector<8x128xf32>
    %c0_12 = arith.constant 0 : index
    %c0_13 = arith.constant 0 : index
    %19 = vector.load %arg6[%c0_12, %c0_13] : memref<1x128xf32, #tpu.memory_space<vmem>>, vector<1x128xf32>
    %20 = vector.broadcast %19 : vector<1x128xf32> to vector<8x128xf32>
    %21 = arith.mulf %20, %18 : vector<8x128xf32>
    %c0_14 = arith.constant 0 : index
    %c0_15 = arith.constant 0 : index
    %22 = vector.load %arg7[%c0_14, %c0_15] : memref<1x128xf32, #tpu.memory_space<vmem>>, vector<1x128xf32>
    %23 = vector.broadcast %22 : vector<1x128xf32> to vector<8x128xf32>
    %24 = arith.addf %21, %23 : vector<8x128xf32>
    %cst_16 = arith.constant -5.000000e+00 : f32
    %cst_17 = arith.constant 2.000000e+00 : f32
    %25 = vector.broadcast %cst_16 : f32 to vector<8x128xf32>
    %26 = arith.maximumf %25, %18 : vector<8x128xf32>
    %27 = vector.broadcast %cst_17 : f32 to vector<8x128xf32>
    %28 = arith.minimumf %27, %26 : vector<8x128xf32>
    %29 = math.exp %28 : vector<8x128xf32>
    %30 = tpu.iota {dimensions = array<i32: 1>} : vector<8x128xi32>
    %c8_i32 = arith.constant 8 : i32
    %31 = vector.broadcast %c8_i32 : i32 to vector<8x128xi32>
    %32 = arith.cmpi slt, %30, %31 : vector<8x128xi32>
    %33 = arith.select %32, %24, %29 : vector<8x128xi1>, vector<8x128xf32>
    %c0_18 = arith.constant 0 : index
    %c0_19 = arith.constant 0 : index
    %34 = vector.load %arg8[%c0_18, %c0_19] : memref<8x128xf32, #tpu.memory_space<vmem>>, vector<8x128xf32>
    tpu.vector_store %arg8[%c0_18, %c0_19], %33 {strides = array<i32>} : memref<8x128xf32, #tpu.memory_space<vmem>>, vector<8x128xf32>,
    return
  }
  func.func @transform_0(%arg0: i32) -> (i32, i32) {
    %c0_i32 = arith.constant 0 : i32
    %c0_i32_0 = arith.constant 0 : i32
    return %arg0, %c0_i32 : i32, i32
  }
  func.func @transform_1(%arg0: i32) -> (i32, i32) {
    %c0_i32 = arith.constant 0 : i32
    %c0_i32_0 = arith.constant 0 : i32
    %c0_i32_1 = arith.constant 0 : i32
    return %c0_i32, %c0_i32_0 : i32, i32
  }
  func.func @transform_2(%arg0: i32) -> (i32, i32) {
    %c0_i32 = arith.constant 0 : i32
    %c0_i32_0 = arith.constant 0 : i32
    %c0_i32_1 = arith.constant 0 : i32
    return %c0_i32, %c0_i32_0 : i32, i32
  }
  func.func @transform_3(%arg0: i32) -> (i32, i32) {
    %c0_i32 = arith.constant 0 : i32
    %c0_i32_0 = arith.constant 0 : i32
    %c0_i32_1 = arith.constant 0 : i32
    return %c0_i32, %c0_i32_0 : i32, i32
  }
  func.func @transform_4(%arg0: i32) -> (i32, i32) {
    %c0_i32 = arith.constant 0 : i32
    %c0_i32_0 = arith.constant 0 : i32
    %c0_i32_1 = arith.constant 0 : i32
    return %c0_i32, %c0_i32_0 : i32, i32
  }
  func.func @transform_5(%arg0: i32) -> (i32, i32) {
    %c0_i32 = arith.constant 0 : i32
    %c0_i32_0 = arith.constant 0 : i32
    %c0_i32_1 = arith.constant 0 : i32
    return %c0_i32, %c0_i32_0 : i32, i32
  }
  func.func @transform_6(%arg0: i32) -> (i32, i32) {
    %c0_i32 = arith.constant 0 : i32
    %c0_i32_0 = arith.constant 0 : i32
    %c0_i32_1 = arith.constant 0 : i32
    return %c0_i32, %c0_i32_0 : i32, i32
  }
  func.func @transform_7(%arg0: i32) -> (i32, i32) {
    %c0_i32 = arith.constant 0 : i32
    %c0_i32_0 = arith.constant 0 : i32
    return %arg0, %c0_i32 : i32, i32
  }
}

</mosaic_0001>

<llo_original>
// kernel: tpu_custom_call.1
$region0: #{tpu_custom_call.1}
  #allocation0 [shape = 'u32[]', space=smem, size = 0x4, offset = 0x4, fixed_abs, tag = 'smem constant byte address 0x4 - core index']
  #allocation1 [shape = 'u32[144,128]{1,0:T(1,128)}', space=vmem, size = 0x12000, scoped, tag = 'internal scratch']
  %s0 = inlined_call_operand.hbm [shape: f32[8,16], index: 0, kind: input, shape index: {}]
  %s1 = inlined_call_operand.hbm [shape: f32[16,128], index: 1, kind: input, shape index: {}]
  %s2 = inlined_call_operand.vmem [shape: f32[1,128], index: 2, kind: input, shape index: {}]
  %s3 = inlined_call_operand.vmem [shape: f32[1,128], index: 3, kind: input, shape index: {}]
  %s4 = inlined_call_operand.hbm [shape: f32[128,128], index: 4, kind: input, shape index: {}]
  %s5 = inlined_call_operand.vmem [shape: f32[1,128], index: 5, kind: input, shape index: {}]
  %s6 = inlined_call_operand.vmem [shape: f32[1,128], index: 6, kind: input, shape index: {}]
  %s7 = inlined_call_operand.hbm [shape: f32[8,128], index: 7, kind: output, shape index: {}]
  %s8 = sld [smem:[#allocation0]]
  $region50: #{tpu_custom_call.1} parent=0
    _
  %s10 = ssub.s32 1, %s8
  %s11 = scalar_select 0, %s10, %s8
  $region1: #{tpu_custom_call.1} parent=0
    #allocation2 [shape = 'u8[4096]{0}', space=vmem, size = 0x1000, scoped, tag = 'input window, operand 0, single buffered']
    #allocation3 [shape = 's32[1]{0}', space=sflag, size = 0x4, scoped, tag = 'scoped memory for tpu_custom_call.1']
    #allocation4 [shape = 's32[1]{0}', space=sflag, size = 0x4, scoped, tag = 'scoped memory for tpu_custom_call.1']
    #allocation5 [shape = 'u8[8192]{0}', space=vmem, size = 0x2000, scoped, tag = 'input window, operand 1, single buffered']
    #allocation6 [shape = 's32[1]{0}', space=sflag, size = 0x4, scoped, tag = 'scoped memory for tpu_custom_call.1']
    #allocation7 [shape = 'u8[65536]{0}', space=vmem, size = 0x10000, scoped, tag = 'input window, operand 4, single buffered']
    #allocation8 [shape = 'u8[4096]{0}', space=vmem, size = 0x1000, scoped, tag = 'output window, operand 0, single buffered']
    %12 = vsyncpa [#allocation3], 0
    %13 = vsyncpa [#allocation6], 0
    %14 = vsyncpa [#allocation4], 0
    // Predicated region
    $region2: #{tpu_custom_call.1} parent=1 // pred_check
      _
    $region3: #{tpu_custom_call.1} parent=1 // pred_check_branch
      %16 = sbr.rel (0) target = $region5
    $region4: #{tpu_custom_call.1} parent=1 // pred_region
      %s18 = ssub.s32 128, 128
      %19 = vsyncadd [#allocation3], %s18
      %s21 = sshll.u32 [#allocation2], 4
      %s22 = int_to_ptr.vmem [resolvable:$true] %s21
      %24 = dma.hbm_to_vmem [thread:$0]  %s0, 128, %s22, [#allocation3]
    $region5: #{tpu_custom_call.1} parent=1 // pred_fallthru
      _
    // Predicated region
    $region6: #{tpu_custom_call.1} parent=1 // pred_check
      _
    $region7: #{tpu_custom_call.1} parent=1 // pred_check_branch
      %26 = sbr.rel (0) target = $region9
    $region8: #{tpu_custom_call.1} parent=1 // pred_region
      %s28 = ssub.s32 256, 256
      %29 = vsyncadd [#allocation6], %s28
      %s30 = sshll.u32 [#allocation5], 4
      %s31 = int_to_ptr.vmem [resolvable:$true] %s30
      %36 = dma.hbm_to_vmem [thread:$0]  %s1, 256, %s31, [#allocation6], 128, 128, 8
    $region9: #{tpu_custom_call.1} parent=1 // pred_fallthru
      _
    // Predicated region
    $region10: #{tpu_custom_call.1} parent=1 // pred_check
      _
    $region11: #{tpu_custom_call.1} parent=1 // pred_check_branch
      %38 = sbr.rel (0) target = $region13
    $region12: #{tpu_custom_call.1} parent=1 // pred_region
      _
    $region13: #{tpu_custom_call.1} parent=1 // pred_fallthru
      _
    // Predicated region
    $region14: #{tpu_custom_call.1} parent=1 // pred_check
      _
    $region15: #{tpu_custom_call.1} parent=1 // pred_check_branch
      %40 = sbr.rel (0) target = $region17
    $region16: #{tpu_custom_call.1} parent=1 // pred_region
      _
    $region17: #{tpu_custom_call.1} parent=1 // pred_fallthru
      _
    // Predicated region
    $region18: #{tpu_custom_call.1} parent=1 // pred_check
      _
    $region19: #{tpu_custom_call.1} parent=1 // pred_check_branch
      %42 = sbr.rel (0) target = $region21
    $region20: #{tpu_custom_call.1} parent=1 // pred_region
      %s44 = ssub.s32 2048, 2048
      %45 = vsyncadd [#allocation6], %s44
      %s46 = sshll.u32 [#allocation7], 4
      %s47 = int_to_ptr.vmem [resolvable:$true] %s46
      %52 = dma.hbm_to_vmem [thread:$0]  %s4, 2048, %s47, [#allocation6], 128, 128, 8
    $region21: #{tpu_custom_call.1} parent=1 // pred_fallthru
      _
    // Predicated region
    $region22: #{tpu_custom_call.1} parent=1 // pred_check
      _
    $region23: #{tpu_custom_call.1} parent=1 // pred_check_branch
      %54 = sbr.rel (0) target = $region25
    $region24: #{tpu_custom_call.1} parent=1 // pred_region
      _
    $region25: #{tpu_custom_call.1} parent=1 // pred_fallthru
      _
    // Predicated region
    $region26: #{tpu_custom_call.1} parent=1 // pred_check
      _
    $region27: #{tpu_custom_call.1} parent=1 // pred_check_branch
      %56 = sbr.rel (0) target = $region29
    $region28: #{tpu_custom_call.1} parent=1 // pred_region
      _
    $region29: #{tpu_custom_call.1} parent=1 // pred_fallthru
      _
    // Predicated region
    $region30: #{tpu_custom_call.1} parent=1 // pred_check
      _
    $region31: #{tpu_custom_call.1} parent=1 // pred_check_branch
      %58 = sbr.rel (0) target = $region33
    $region32: #{tpu_custom_call.1} parent=1 // pred_region
      %59 = dma.done [#allocation3], 128
    $region33: #{tpu_custom_call.1} parent=1 // pred_fallthru
      _
    // Predicated region
    $region34: #{tpu_custom_call.1} parent=1 // pred_check
      _
    $region35: #{tpu_custom_call.1} parent=1 // pred_check_branch
      %61 = sbr.rel (0) target = $region37
    $region36: #{tpu_custom_call.1} parent=1 // pred_region
      %62 = dma.done [#allocation6], 256
    $region37: #{tpu_custom_call.1} parent=1 // pred_fallthru
      _
    // Predicated region
    $region38: #{tpu_custom_call.1} parent=1 // pred_check
      _
    $region39: #{tpu_custom_call.1} parent=1 // pred_check_branch
      %64 = sbr.rel (0) target = $region41
    $region40: #{tpu_custom_call.1} parent=1 // pred_region
      %65 = dma.done [#allocation6], 2048
    $region41: #{tpu_custom_call.1} parent=1 // pred_fallthru
      _
    %v66 = vld [vmem:[#allocation2] sm:$0xff]
    %v67 = vmul.f32 %v66, %v66
    %vm68 = vcmask 130048
    %v69 = vsel %vm68, %v67, 0.0
    %70 = vadd.xlane.f32.xlu0 %v69
    %v71 = vpop.xlane.xlu0 %70
    %v72 = vld [vmem:[#allocation5] sm:$0xff]
    %v73 = vld [vmem:[#allocation5 + $0x8] sm:$0xff]
    %v75 = vsel %vm68, %v66, 0
    %77 = vmatprep.subr.mxu0 0.0
    %v78 = vand.u32 %v72, 4294901760
    %79 = vmatpush1.msra.mxu0 %v78
    %80 = vmatprep.subr.mxu0 0.0
    %v81 = vand.u32 %v73, 4294901760
    %82 = vmatpush1.msra.mxu0 %v81
    %83 = vmatprep.subr.mxu0 0.0
    %84 = vmatpush1.msra.mxu0 0.0
    %85 = vmatprep.subr.mxu0 0.0
    %86 = vmatpush1.msra.mxu0 0.0
    %87 = vmatprep.subr.mxu0 0.0
    %88 = vmatpush1.msra.mxu0 0.0
    %89 = vmatprep.subr.mxu0 0.0
    %90 = vmatpush1.msra.mxu0 0.0
    %91 = vmatprep.subr.mxu0 0.0
    %92 = vmatpush1.msra.mxu0 0.0
    %93 = vmatprep.subr.mxu0 0.0
    %94 = vmatpush1.msra.mxu0 0.0
    %95 = vmatprep.subr.mxu0 0.0
    %96 = vmatpush1.msra.mxu0 0.0
    %97 = vmatprep.subr.mxu0 0.0
    %98 = vmatpush1.msra.mxu0 0.0
    %99 = vmatprep.subr.mxu0 0.0
    %100 = vmatpush1.msra.mxu0 0.0
    %101 = vmatprep.subr.mxu0 0.0
    %102 = vmatpush1.msra.mxu0 0.0
    %103 = vmatprep.subr.mxu0 0.0
    %104 = vmatpush1.msra.mxu0 0.0
    %105 = vmatprep.subr.mxu0 0.0
    %106 = vmatpush1.msra.mxu0 0.0
    %107 = vmatprep.subr.mxu0 0.0
    %108 = vmatpush1.msra.mxu0 0.0
    %109 = vmatprep.subr.mxu0 0.0
    %110 = vmatpush1.msra.mxu0 0.0
    %111 = vmatprep.subr.mxu0 0.0
    %112 = vmatpush1.msra.mxu0 0.0
    %113 = vmatprep.subr.mxu0 0.0
    %114 = vmatpush1.msra.mxu0 0.0
    %115 = vmatprep.subr.mxu0 0.0
    %116 = vmatpush1.msra.mxu0 0.0
    %117 = vmatprep.subr.mxu0 0.0
    %118 = vmatpush1.msra.mxu0 0.0
    %119 = vmatprep.subr.mxu0 0.0
    %120 = vmatpush1.msra.mxu0 0.0
    %121 = vmatprep.subr.mxu0 0.0
    %122 = vmatpush1.msra.mxu0 0.0
    %123 = vmatprep.subr.mxu0 0.0
    %124 = vmatpush1.msra.mxu0 0.0
    %125 = vmatprep.subr.mxu0 0.0
    %126 = vmatpush1.msra.mxu0 0.0
    %127 = vmatprep.subr.mxu0 0.0
    %128 = vmatpush1.msra.mxu0 0.0
    %129 = vmatprep.subr.mxu0 0.0
    %130 = vmatpush1.msra.mxu0 0.0
    %131 = vmatprep.subr.mxu0 0.0
    %132 = vmatpush1.msra.mxu0 0.0
    %133 = vmatprep.subr.mxu0 0.0
    %134 = vmatpush1.msra.mxu0 0.0
    %135 = vmatprep.subr.mxu0 0.0
    %136 = vmatpush1.msra.mxu0 0.0
    %137 = vmatprep.subr.mxu0 0.0
    %138 = vmatpush1.msra.mxu0 0.0
    %139 = vmatprep.subr.mxu0 0.0
    %140 = vmatpush1.msra.mxu0 0.0
    %141 = vmatprep.subr.mxu0 0.0
    %142 = vmatpush1.msra.mxu0 0.0
    %143 = vmatprep.mubr.f32.mxu0 0.0
    %v144 = vand.u32 %v75, 4294901760
    %v145 = vsub.f32 %v75, %v144
    %v146 = vand.u32 %v145, 4294901760
    %v147 = vsub.f32 %v145, %v146
    %v148 = vand.u32 %v147, 4294901760
    %149 = vmatmul.mubr.f32.gmra.mrb[0].mxu0 %v148
    %v150 = vpop.f32.mrb[0].mxu0
    %v151 = vadd.f32 0.0, %v150
    %v152 = vpop.f32.mrb[0].mxu0
    %153 = vdwg.mxu0
    %154 = vmatprep.subr.mxu0 0.0
    %v155 = vand.u32 %v72, 4294901760
    %v156 = vsub.f32 %v72, %v155
    %v157 = vand.u32 %v156, 4294901760
    %v158 = vsub.f32 %v156, %v157
    %v159 = vand.u32 %v158, 4294901760
    %160 = vmatpush1.msra.mxu0 %v159
    %161 = vmatprep.subr.mxu0 0.0
    %v162 = vand.u32 %v73, 4294901760
    %v163 = vsub.f32 %v73, %v162
    %v164 = vand.u32 %v163, 4294901760
    %v165 = vsub.f32 %v163, %v164
    %v166 = vand.u32 %v165, 4294901760
    %167 = vmatpush1.msra.mxu0 %v166
    %168 = vmatprep.subr.mxu0 0.0
    %169 = vmatpush1.msra.mxu0 0.0
    %170 = vmatprep.subr.mxu0 0.0
    %171 = vmatpush1.msra.mxu0 0.0
    %172 = vmatprep.subr.mxu0 0.0
    %173 = vmatpush1.msra.mxu0 0.0
    %174 = vmatprep.subr.mxu0 0.0
    %175 = vmatpush1.msra.mxu0 0.0
    %176 = vmatprep.subr.mxu0 0.0
    %177 = vmatpush1.msra.mxu0 0.0
    %178 = vmatprep.subr.mxu0 0.0
    %179 = vmatpush1.msra.mxu0 0.0
    %180 = vmatprep.subr.mxu0 0.0
    %181 = vmatpush1.msra.mxu0 0.0
    %182 = vmatprep.subr.mxu0 0.0
    %183 = vmatpush1.msra.mxu0 0.0
    %184 = vmatprep.subr.mxu0 0.0
    %185 = vmatpush1.msra.mxu0 0.0
    %186 = vmatprep.subr.mxu0 0.0
    %187 = vmatpush1.msra.mxu0 0.0
    %188 = vmatprep.subr.mxu0 0.0
    %189 = vmatpush1.msra.mxu0 0.0
    %190 = vmatprep.subr.mxu0 0.0
    %191 = vmatpush1.msra.mxu0 0.0
    %192 = vmatprep.subr.mxu0 0.0
    %193 = vmatpush1.msra.mxu0 0.0
    %194 = vmatprep.subr.mxu0 0.0
    %195 = vmatpush1.msra.mxu0 0.0
    %196 = vmatprep.subr.mxu0 0.0
    %197 = vmatpush1.msra.mxu0 0.0
    %198 = vmatprep.subr.mxu0 0.0
    %199 = vmatpush1.msra.mxu0 0.0
    %200 = vmatprep.subr.mxu0 0.0
    %201 = vmatpush1.msra.mxu0 0.0
    %202 = vmatprep.subr.mxu0 0.0
    %203 = vmatpush1.msra.mxu0 0.0
    %204 = vmatprep.subr.mxu0 0.0
    %205 = vmatpush1.msra.mxu0 0.0
    %206 = vmatprep.subr.mxu0 0.0
    %207 = vmatpush1.msra.mxu0 0.0
    %208 = vmatprep.subr.mxu0 0.0
    %209 = vmatpush1.msra.mxu0 0.0
    %210 = vmatprep.subr.mxu0 0.0
    %211 = vmatpush1.msra.mxu0 0.0
    %212 = vmatprep.subr.mxu0 0.0
    %213 = vmatpush1.msra.mxu0 0.0
    %214 = vmatprep.subr.mxu0 0.0
    %215 = vmatpush1.msra.mxu0 0.0
    %216 = vmatprep.subr.mxu0 0.0
    %217 = vmatpush1.msra.mxu0 0.0
    %218 = vmatprep.subr.mxu0 0.0
    %219 = vmatpush1.msra.mxu0 0.0
    %220 = vmatprep.subr.mxu0 0.0
    %221 = vmatpush1.msra.mxu0 0.0
    %222 = vmatprep.subr.mxu0 0.0
    %223 = vmatpush1.msra.mxu0 0.0
    %224 = vmatprep.subr.mxu0 0.0
    %225 = vmatpush1.msra.mxu0 0.0
    %226 = vmatprep.subr.mxu0 0.0
    %227 = vmatpush1.msra.mxu0 0.0
    %228 = vmatprep.mubr.f32.mxu0 0.0
    %v229 = vand.u32 %v75, 4294901760
    %230 = vmatmul.mubr.f32.gmra.mrb[0].mxu0 %v229
    %v231 = vpop.f32.mrb[0].mxu0
    %v232 = vadd.f32 %v151, %v231
    %v233 = vpop.f32.mrb[0].mxu0
    %234 = vdwg.mxu0
    %235 = vmatprep.subr.mxu0 0.0
    %v236 = vand.u32 %v72, 4294901760
    %v237 = vsub.f32 %v72, %v236
    %238 = vmatpush1.msra.mxu0 %v237
    %239 = vmatprep.subr.mxu0 0.0
    %v240 = vand.u32 %v73, 4294901760
    %v241 = vsub.f32 %v73, %v240
    %242 = vmatpush1.msra.mxu0 %v241
    %243 = vmatprep.subr.mxu0 0.0
    %244 = vmatpush1.msra.mxu0 0.0
    %245 = vmatprep.subr.mxu0 0.0
    %246 = vmatpush1.msra.mxu0 0.0
    %247 = vmatprep.subr.mxu0 0.0
    %248 = vmatpush1.msra.mxu0 0.0
    %249 = vmatprep.subr.mxu0 0.0
    %250 = vmatpush1.msra.mxu0 0.0
    %251 = vmatprep.subr.mxu0 0.0
    %252 = vmatpush1.msra.mxu0 0.0
    %253 = vmatprep.subr.mxu0 0.0
    %254 = vmatpush1.msra.mxu0 0.0
    %255 = vmatprep.subr.mxu0 0.0
    %256 = vmatpush1.msra.mxu0 0.0
    %257 = vmatprep.subr.mxu0 0.0
    %258 = vmatpush1.msra.mxu0 0.0
    %259 = vmatprep.subr.mxu0 0.0
    %260 = vmatpush1.msra.mxu0 0.0
    %261 = vmatprep.subr.mxu0 0.0
    %262 = vmatpush1.msra.mxu0 0.0
    %263 = vmatprep.subr.mxu0 0.0
    %264 = vmatpush1.msra.mxu0 0.0
    %265 = vmatprep.subr.mxu0 0.0
    %266 = vmatpush1.msra.mxu0 0.0
    %267 = vmatprep.subr.mxu0 0.0
    %268 = vmatpush1.msra.mxu0 0.0
    %269 = vmatprep.subr.mxu0 0.0
    %270 = vmatpush1.msra.mxu0 0.0
    %271 = vmatprep.subr.mxu0 0.0
    %272 = vmatpush1.msra.mxu0 0.0
    %273 = vmatprep.subr.mxu0 0.0
    %274 = vmatpush1.msra.mxu0 0.0
    %275 = vmatprep.subr.mxu0 0.0
    %276 = vmatpush1.msra.mxu0 0.0
    %277 = vmatprep.subr.mxu0 0.0
    %278 = vmatpush1.msra.mxu0 0.0
    %279 = vmatprep.subr.mxu0 0.0
    %280 = vmatpush1.msra.mxu0 0.0
    %281 = vmatprep.subr.mxu0 0.0
    %282 = vmatpush1.msra.mxu0 0.0
    %283 = vmatprep.subr.mxu0 0.0
    %284 = vmatpush1.msra.mxu0 0.0
    %285 = vmatprep.subr.mxu0 0.0
    %286 = vmatpush1.msra.mxu0 0.0
    %287 = vmatprep.subr.mxu0 0.0
    %288 = vmatpush1.msra.mxu0 0.0
    %289 = vmatprep.subr.mxu0 0.0
    %290 = vmatpush1.msra.mxu0 0.0
    %291 = vmatprep.subr.mxu0 0.0
    %292 = vmatpush1.msra.mxu0 0.0
    %293 = vmatprep.subr.mxu0 0.0
    %294 = vmatpush1.msra.mxu0 0.0
    %295 = vmatprep.subr.mxu0 0.0
    %296 = vmatpush1.msra.mxu0 0.0
    %297 = vmatprep.subr.mxu0 0.0
    %298 = vmatpush1.msra.mxu0 0.0
    %299 = vmatprep.subr.mxu0 0.0
    %300 = vmatpush1.msra.mxu0 0.0
    %301 = vmatprep.subr.mxu0 0.0
    %302 = vmatpush1.msra.mxu0 0.0
    %303 = vmatprep.mubr.f32.mxu0 0.0
    %v304 = vand.u32 %v75, 4294901760
    %v305 = vsub.f32 %v75, %v304
    %306 = vmatmul.mubr.f32.gmra.mrb[0].mxu0 %v305
    %v307 = vpop.f32.mrb[0].mxu0
    %v308 = vadd.f32 %v232, %v307
    %v309 = vpop.f32.mrb[0].mxu0
    %310 = vdwg.mxu0
    %311 = vmatprep.subr.mxu0 0.0
    %v312 = vand.u32 %v72, 4294901760
    %313 = vmatpush1.msra.mxu0 %v312
    %314 = vmatprep.subr.mxu0 0.0
    %v315 = vand.u32 %v73, 4294901760
    %316 = vmatpush1.msra.mxu0 %v315
    %317 = vmatprep.subr.mxu0 0.0
    %318 = vmatpush1.msra.mxu0 0.0
    %319 = vmatprep.subr.mxu0 0.0
    %320 = vmatpush1.msra.mxu0 0.0
    %321 = vmatprep.subr.mxu0 0.0
    %322 = vmatpush1.msra.mxu0 0.0
    %323 = vmatprep.subr.mxu0 0.0
    %324 = vmatpush1.msra.mxu0 0.0
    %325 = vmatprep.subr.mxu0 0.0
    %326 = vmatpush1.msra.mxu0 0.0
    %327 = vmatprep.subr.mxu0 0.0
    %328 = vmatpush1.msra.mxu0 0.0
    %329 = vmatprep.subr.mxu0 0.0
    %330 = vmatpush1.msra.mxu0 0.0
    %331 = vmatprep.subr.mxu0 0.0
    %332 = vmatpush1.msra.mxu0 0.0
    %333 = vmatprep.subr.mxu0 0.0
    %334 = vmatpush1.msra.mxu0 0.0
    %335 = vmatprep.subr.mxu0 0.0
    %336 = vmatpush1.msra.mxu0 0.0
    %337 = vmatprep.subr.mxu0 0.0
    %338 = vmatpush1.msra.mxu0 0.0
    %339 = vmatprep.subr.mxu0 0.0
    %340 = vmatpush1.msra.mxu0 0.0
    %341 = vmatprep.subr.mxu0 0.0
    %342 = vmatpush1.msra.mxu0 0.0
    %343 = vmatprep.subr.mxu0 0.0
    %344 = vmatpush1.msra.mxu0 0.0
    %345 = vmatprep.subr.mxu0 0.0
    %346 = vmatpush1.msra.mxu0 0.0
    %347 = vmatprep.subr.mxu0 0.0
    %348 = vmatpush1.msra.mxu0 0.0
    %349 = vmatprep.subr.mxu0 0.0
    %350 = vmatpush1.msra.mxu0 0.0
    %351 = vmatprep.subr.mxu0 0.0
    %352 = vmatpush1.msra.mxu0 0.0
    %353 = vmatprep.subr.mxu0 0.0
    %354 = vmatpush1.msra.mxu0 0.0
    %355 = vmatprep.subr.mxu0 0.0
    %356 = vmatpush1.msra.mxu0 0.0
    %357 = vmatprep.subr.mxu0 0.0
    %358 = vmatpush1.msra.mxu0 0.0
    %359 = vmatprep.subr.mxu0 0.0
    %360 = vmatpush1.msra.mxu0 0.0
    %361 = vmatprep.subr.mxu0 0.0
    %362 = vmatpush1.msra.mxu0 0.0
    %363 = vmatprep.subr.mxu0 0.0
    %364 = vmatpush1.msra.mxu0 0.0
    %365 = vmatprep.subr.mxu0 0.0
    %366 = vmatpush1.msra.mxu0 0.0
    %367 = vmatprep.subr.mxu0 0.0
    %368 = vmatpush1.msra.mxu0 0.0
    %369 = vmatprep.subr.mxu0 0.0
    %370 = vmatpush1.msra.mxu0 0.0
    %371 = vmatprep.subr.mxu0 0.0
    %372 = vmatpush1.msra.mxu0 0.0
    %373 = vmatprep.subr.mxu0 0.0
    %374 = vmatpush1.msra.mxu0 0.0
    %375 = vmatprep.subr.mxu0 0.0
    %376 = vmatpush1.msra.mxu0 0.0
    %377 = vmatprep.mubr.f32.mxu0 0.0
    %v378 = vand.u32 %v75, 4294901760
    %v379 = vsub.f32 %v75, %v378
    %v380 = vand.u32 %v379, 4294901760
    %381 = vmatmul.mubr.f32.gmra.mrb[0].mxu0 %v380
    %v382 = vpop.f32.mrb[0].mxu0
    %v383 = vadd.f32 %v308, %v382
    %v384 = vpop.f32.mrb[0].mxu0
    %385 = vdwg.mxu0
    %386 = vmatprep.subr.mxu0 0.0
    %v387 = vand.u32 %v72, 4294901760
    %v388 = vsub.f32 %v72, %v387
    %v389 = vand.u32 %v388, 4294901760
    %390 = vmatpush1.msra.mxu0 %v389
    %391 = vmatprep.subr.mxu0 0.0
    %v392 = vand.u32 %v73, 4294901760
    %v393 = vsub.f32 %v73, %v392
    %v394 = vand.u32 %v393, 4294901760
    %395 = vmatpush1.msra.mxu0 %v394
    %396 = vmatprep.subr.mxu0 0.0
    %397 = vmatpush1.msra.mxu0 0.0
    %398 = vmatprep.subr.mxu0 0.0
    %399 = vmatpush1.msra.mxu0 0.0
    %400 = vmatprep.subr.mxu0 0.0
    %401 = vmatpush1.msra.mxu0 0.0
    %402 = vmatprep.subr.mxu0 0.0
    %403 = vmatpush1.msra.mxu0 0.0
    %404 = vmatprep.subr.mxu0 0.0
    %405 = vmatpush1.msra.mxu0 0.0
    %406 = vmatprep.subr.mxu0 0.0
    %407 = vmatpush1.msra.mxu0 0.0
    %408 = vmatprep.subr.mxu0 0.0
    %409 = vmatpush1.msra.mxu0 0.0
    %410 = vmatprep.subr.mxu0 0.0
    %411 = vmatpush1.msra.mxu0 0.0
    %412 = vmatprep.subr.mxu0 0.0
    %413 = vmatpush1.msra.mxu0 0.0
    %414 = vmatprep.subr.mxu0 0.0
    %415 = vmatpush1.msra.mxu0 0.0
    %416 = vmatprep.subr.mxu0 0.0
    %417 = vmatpush1.msra.mxu0 0.0
    %418 = vmatprep.subr.mxu0 0.0
    %419 = vmatpush1.msra.mxu0 0.0
    %420 = vmatprep.subr.mxu0 0.0
    %421 = vmatpush1.msra.mxu0 0.0
    %422 = vmatprep.subr.mxu0 0.0
    %423 = vmatpush1.msra.mxu0 0.0
    %424 = vmatprep.subr.mxu0 0.0
    %425 = vmatpush1.msra.mxu0 0.0
    %426 = vmatprep.subr.mxu0 0.0
    %427 = vmatpush1.msra.mxu0 0.0
    %428 = vmatprep.subr.mxu0 0.0
    %429 = vmatpush1.msra.mxu0 0.0
    %430 = vmatprep.subr.mxu0 0.0
    %431 = vmatpush1.msra.mxu0 0.0
    %432 = vmatprep.subr.mxu0 0.0
    %433 = vmatpush1.msra.mxu0 0.0
    %434 = vmatprep.subr.mxu0 0.0
    %435 = vmatpush1.msra.mxu0 0.0
    %436 = vmatprep.subr.mxu0 0.0
    %437 = vmatpush1.msra.mxu0 0.0
    %438 = vmatprep.subr.mxu0 0.0
    %439 = vmatpush1.msra.mxu0 0.0
    %440 = vmatprep.subr.mxu0 0.0
    %441 = vmatpush1.msra.mxu0 0.0
    %442 = vmatprep.subr.mxu0 0.0
    %443 = vmatpush1.msra.mxu0 0.0
    %444 = vmatprep.subr.mxu0 0.0
    %445 = vmatpush1.msra.mxu0 0.0
    %446 = vmatprep.subr.mxu0 0.0
    %447 = vmatpush1.msra.mxu0 0.0
    %448 = vmatprep.subr.mxu0 0.0
    %449 = vmatpush1.msra.mxu0 0.0
    %450 = vmatprep.subr.mxu0 0.0
    %451 = vmatpush1.msra.mxu0 0.0
    %452 = vmatprep.subr.mxu0 0.0
    %453 = vmatpush1.msra.mxu0 0.0
    %454 = vmatprep.subr.mxu0 0.0
    %455 = vmatpush1.msra.mxu0 0.0
    %456 = vmatprep.mubr.f32.mxu0 0.0
    %v457 = vand.u32 %v75, 4294901760
    %458 = vmatmul.mubr.f32.gmra.mrb[0].mxu0 %v457
    %v459 = vpop.f32.mrb[0].mxu0
    %v460 = vadd.f32 %v383, %v459
    %v461 = vpop.f32.mrb[0].mxu0
    %462 = vdwg.mxu0
    %463 = vmatprep.subr.mxu0 0.0
    %v464 = vand.u32 %v72, 4294901760
    %465 = vmatpush1.msra.mxu0 %v464
    %466 = vmatprep.subr.mxu0 0.0
    %v467 = vand.u32 %v73, 4294901760
    %468 = vmatpush1.msra.mxu0 %v467
    %469 = vmatprep.subr.mxu0 0.0
    %470 = vmatpush1.msra.mxu0 0.0
    %471 = vmatprep.subr.mxu0 0.0
    %472 = vmatpush1.msra.mxu0 0.0
    %473 = vmatprep.subr.mxu0 0.0
    %474 = vmatpush1.msra.mxu0 0.0
    %475 = vmatprep.subr.mxu0 0.0
    %476 = vmatpush1.msra.mxu0 0.0
    %477 = vmatprep.subr.mxu0 0.0
    %478 = vmatpush1.msra.mxu0 0.0
    %479 = vmatprep.subr.mxu0 0.0
    %480 = vmatpush1.msra.mxu0 0.0
    %481 = vmatprep.subr.mxu0 0.0
    %482 = vmatpush1.msra.mxu0 0.0
    %483 = vmatprep.subr.mxu0 0.0
    %484 = vmatpush1.msra.mxu0 0.0
    %485 = vmatprep.subr.mxu0 0.0
    %486 = vmatpush1.msra.mxu0 0.0
    %487 = vmatprep.subr.mxu0 0.0
    %488 = vmatpush1.msra.mxu0 0.0
    %489 = vmatprep.subr.mxu0 0.0
    %490 = vmatpush1.msra.mxu0 0.0
    %491 = vmatprep.subr.mxu0 0.0
    %492 = vmatpush1.msra.mxu0 0.0
    %493 = vmatprep.subr.mxu0 0.0
    %494 = vmatpush1.msra.mxu0 0.0
    %495 = vmatprep.subr.mxu0 0.0
    %496 = vmatpush1.msra.mxu0 0.0
    %497 = vmatprep.subr.mxu0 0.0
    %498 = vmatpush1.msra.mxu0 0.0
    %499 = vmatprep.subr.mxu0 0.0
    %500 = vmatpush1.msra.mxu0 0.0
    %501 = vmatprep.subr.mxu0 0.0
    %502 = vmatpush1.msra.mxu0 0.0
    %503 = vmatprep.subr.mxu0 0.0
    %504 = vmatpush1.msra.mxu0 0.0
    %505 = vmatprep.subr.mxu0 0.0
    %506 = vmatpush1.msra.mxu0 0.0
    %507 = vmatprep.subr.mxu0 0.0
    %508 = vmatpush1.msra.mxu0 0.0
    %509 = vmatprep.subr.mxu0 0.0
    %510 = vmatpush1.msra.mxu0 0.0
    %511 = vmatprep.subr.mxu0 0.0
    %512 = vmatpush1.msra.mxu0 0.0
    %513 = vmatprep.subr.mxu0 0.0
    %514 = vmatpush1.msra.mxu0 0.0
    %515 = vmatprep.subr.mxu0 0.0
    %516 = vmatpush1.msra.mxu0 0.0
    %517 = vmatprep.subr.mxu0 0.0
    %518 = vmatpush1.msra.mxu0 0.0
    %519 = vmatprep.subr.mxu0 0.0
    %520 = vmatpush1.msra.mxu0 0.0
    %521 = vmatprep.subr.mxu0 0.0
    %522 = vmatpush1.msra.mxu0 0.0
    %523 = vmatprep.subr.mxu0 0.0
    %524 = vmatpush1.msra.mxu0 0.0
    %525 = vmatprep.subr.mxu0 0.0
    %526 = vmatpush1.msra.mxu0 0.0
    %527 = vmatprep.subr.mxu0 0.0
    %528 = vmatpush1.msra.mxu0 0.0
    %529 = vmatprep.mubr.f32.mxu0 0.0
    %v530 = vand.u32 %v75, 4294901760
    %531 = vmatmul.mubr.f32.gmra.mrb[0].mxu0 %v530
    %v532 = vpop.f32.mrb[0].mxu0
    %v533 = vadd.f32 %v460, %v532
    %v534 = vpop.f32.mrb[0].mxu0
    %535 = vdwg.mxu0
    %v536 = vld [vmem:[%s2] sm:$0x1]
    %v538 = vlaneseq
    %v539 = vshrl.u32 %v538, 7
    %v540 = vsub.s32 0, %v539
    %v541 = vrot.slane %v536, %v540
    %v543 = vadd.f32 %v71, %v541
    %v544 = vadd.f32 %v543, %v533
    %v545 = vmax.f32 %v544, 0.0
    %v546 = vld [vmem:[%s3] sm:$0x1]
    %v548 = vlaneseq
    %v549 = vshrl.u32 %v548, 7
    %v550 = vsub.s32 0, %v549
    %v551 = vrot.slane %v546, %v550
    %v553 = vmul.f32 %v545, %v551
    %v554 = vmul.f32 %v553, 1.442695
    %v555 = vpow.pop %v554
    %v556 = vld [vmem:[#allocation7] sm:$0xff]
    %v557 = vld [vmem:[#allocation7 + $0x8] sm:$0xff]
    %v558 = vld [vmem:[#allocation7 + $0x10] sm:$0xff]
    %v559 = vld [vmem:[#allocation7 + $0x18] sm:$0xff]
    %v560 = vld [vmem:[#allocation7 + $0x20] sm:$0xff]
    %v561 = vld [vmem:[#allocation7 + $0x28] sm:$0xff]
    %v562 = vld [vmem:[#allocation7 + $0x30] sm:$0xff]
    %v563 = vld [vmem:[#allocation7 + $0x38] sm:$0xff]
    %v564 = vld [vmem:[#allocation7 + $0x40] sm:$0xff]
    %v565 = vld [vmem:[#allocation7 + $0x48] sm:$0xff]
    %v566 = vld [vmem:[#allocation7 + $0x50] sm:$0xff]
    %v567 = vld [vmem:[#allocation7 + $0x58] sm:$0xff]
    %v568 = vld [vmem:[#allocation7 + $0x60] sm:$0xff]
    %v569 = vld [vmem:[#allocation7 + $0x68] sm:$0xff]
    %v570 = vld [vmem:[#allocation7 + $0x70] sm:$0xff]
    %v571 = vld [vmem:[#allocation7 + $0x78] sm:$0xff]
    %572 = vmatprep.subr.mxu0 0.0
    %573 = vmatpush1.msra.mxu0 %v556
    %574 = vmatprep.subr.mxu0 0.0
    %575 = vmatpush1.msra.mxu0 %v557
    %576 = vmatprep.subr.mxu0 0.0
    %577 = vmatpush1.msra.mxu0 %v558
    %578 = vmatprep.subr.mxu0 0.0
    %579 = vmatpush1.msra.mxu0 %v559
    %580 = vmatprep.subr.mxu0 0.0
    %581 = vmatpush1.msra.mxu0 %v560
    %582 = vmatprep.subr.mxu0 0.0
    %583 = vmatpush1.msra.mxu0 %v561
    %584 = vmatprep.subr.mxu0 0.0
    %585 = vmatpush1.msra.mxu0 %v562
    %586 = vmatprep.subr.mxu0 0.0
    %587 = vmatpush1.msra.mxu0 %v563
    %588 = vmatprep.subr.mxu0 0.0
    %589 = vmatpush1.msra.mxu0 %v564
    %590 = vmatprep.subr.mxu0 0.0
    %591 = vmatpush1.msra.mxu0 %v565
    %592 = vmatprep.subr.mxu0 0.0
    %593 = vmatpush1.msra.mxu0 %v566
    %594 = vmatprep.subr.mxu0 0.0
    %595 = vmatpush1.msra.mxu0 %v567
    %596 = vmatprep.subr.mxu0 0.0
    %597 = vmatpush1.msra.mxu0 %v568
    %598 = vmatprep.subr.mxu0 0.0
    %599 = vmatpush1.msra.mxu0 %v569
    %600 = vmatprep.subr.mxu0 0.0
    %601 = vmatpush1.msra.mxu0 %v570
    %602 = vmatprep.subr.mxu0 0.0
    %603 = vmatpush1.msra.mxu0 %v571
    %604 = vmatprep.subr.mxu0 0.0
    %605 = vmatpush1.msra.mxu0 0.0
    %606 = vmatprep.subr.mxu0 0.0
    %607 = vmatpush1.msra.mxu0 0.0
    %608 = vmatprep.subr.mxu0 0.0
    %609 = vmatpush1.msra.mxu0 0.0
    %610 = vmatprep.subr.mxu0 0.0
    %611 = vmatpush1.msra.mxu0 0.0
    %612 = vmatprep.subr.mxu0 0.0
    %613 = vmatpush1.msra.mxu0 0.0
    %614 = vmatprep.subr.mxu0 0.0
    %615 = vmatpush1.msra.mxu0 0.0
    %616 = vmatprep.subr.mxu0 0.0
    %617 = vmatpush1.msra.mxu0 0.0
    %618 = vmatprep.subr.mxu0 0.0
    %619 = vmatpush1.msra.mxu0 0.0
    %620 = vmatprep.subr.mxu0 0.0
    %621 = vmatpush1.msra.mxu0 0.0
    %622 = vmatprep.subr.mxu0 0.0
    %623 = vmatpush1.msra.mxu0 0.0
    %624 = vmatprep.subr.mxu0 0.0
    %625 = vmatpush1.msra.mxu0 0.0
    %626 = vmatprep.subr.mxu0 0.0
    %627 = vmatpush1.msra.mxu0 0.0
    %628 = vmatprep.subr.mxu0 0.0
    %629 = vmatpush1.msra.mxu0 0.0
    %630 = vmatprep.subr.mxu0 0.0
    %631 = vmatpush1.msra.mxu0 0.0
    %632 = vmatprep.subr.mxu0 0.0
    %633 = vmatpush1.msra.mxu0 0.0
    %634 = vmatprep.subr.mxu0 0.0
    %635 = vmatpush1.msra.mxu0 0.0
    %636 = vmatprep.mubr.f32.mxu0 0.0
    %637 = vmatmul.mubr.f32.gmra.mrb[0].mxu0 %v555
    %v638 = vpop.f32.mrb[0].mxu0
    %v639 = vadd.f32 0.0, %v638
    %v640 = vpop.f32.mrb[0].mxu0
    %641 = vdwg.mxu0
    %v642 = vld [vmem:[%s5] sm:$0x1]
    %v644 = vlaneseq
    %v645 = vshrl.u32 %v644, 7
    %v646 = vsub.s32 0, %v645
    %v647 = vrot.slane %v642, %v646
    %v649 = vmul.f32 %v647, %v639
    %v650 = vld [vmem:[%s6] sm:$0x1]
    %v652 = vlaneseq
    %v653 = vshrl.u32 %v652, 7
    %v654 = vsub.s32 0, %v653
    %v655 = vrot.slane %v650, %v654
    %v657 = vadd.f32 %v649, %v655
    %v658 = vmax.f32 %v639, -5.0
    %v659 = vmin.f32 %v658, 2.0
    %v660 = vmul.f32 %v659, 1.442695
    %v661 = vpow.pop %v660
    %v662 = vlaneseq
    %v663 = vand.u32 %v662, 127
    %vm664 = vcmp.lt.s32.totalorder %v663, 8
    %v665 = vsel %vm664, %v657, %v661
    %666 = vst [vmem:[#allocation8] sm:$0xff] %v665
    // Predicated region
    $region42: #{tpu_custom_call.1} parent=1 // pred_check
      _
    $region43: #{tpu_custom_call.1} parent=1 // pred_check_branch
      %668 = sbr.rel (0) target = $region45
    $region44: #{tpu_custom_call.1} parent=1 // pred_region
      %s670 = ssub.s32 128, 128
      %671 = vsyncadd [#allocation4], %s670
      %s673 = sshll.u32 [#allocation8], 4
      %s674 = int_to_ptr.vmem [resolvable:$true] %s673
      %676 = dma.vmem_to_hbm [thread:$0]  %s674, 128, %s7, [#allocation4]
    $region45: #{tpu_custom_call.1} parent=1 // pred_fallthru
      _
    // Predicated region
    $region46: #{tpu_custom_call.1} parent=1 // pred_check
      _
    $region47: #{tpu_custom_call.1} parent=1 // pred_check_branch
      %678 = sbr.rel (0) target = $region49
    $region48: #{tpu_custom_call.1} parent=1 // pred_region
      %679 = dma.done [#allocation4], 128
    $region49: #{tpu_custom_call.1} parent=1 // pred_fallthru
      _
    %680 = vsyncpa [#allocation3], 1
    %681 = vsyncpa [#allocation6], 1
    %682 = vsyncpa [#allocation4], 1

</llo_original>
